<compile_context>
chip_gen: v5e
topology: v5e:2x2
jax: 0.10.0
libtpu: 0.0.40
codegen_flags: <defaults>
</compile_context>

<pallas_src>
from functools import partial

import jax
import jax.numpy as jnp
from jax.experimental import pallas as pl
from jax.experimental.pallas import tpu as pltpu


def _embed_kernel(patches_ref, w_ref, pos_ref, o_ref):
    # patches_ref: (TN, Kp)  w_ref: (Kp, D)  pos_ref: (TN, D)  o_ref: (TN, D)
    y = jnp.dot(patches_ref[...], w_ref[...],
                preferred_element_type=jnp.float32)        # MXU, f32 accumulate
    o_ref[...] = (y + pos_ref[...]).astype(o_ref.dtype)    # bias folded into pos


def _round_up(x, m):
    return ((x + m - 1) // m) * m


def _choose_tile_and_pad(num_patches, max_tile):
    """Return (tile, padded_num_patches) with tile % 8 == 0 or tile == Np."""
    # Prefer an exact divisor (no padding, no output slice).
    for t in range(min(max_tile, num_patches), 0, -1):
        if num_patches % t == 0 and (t % 8 == 0 or t == num_patches):
            return t, num_patches
    # Otherwise pad Np to a multiple of an 8-aligned tile; padded rows compute
    # zeros and are sliced off in the wrapper.
    t = max(8, (min(max_tile, _round_up(num_patches, 8)) // 8) * 8)
    return t, _round_up(num_patches, t)


@partial(jax.jit, static_argnames=("patch_size", "compute_dtype", "out_dtype",
                                   "block_patches", "vmem_limit_bytes"))
def siglip_vision_embeddings(pixel_values, conv_weight, conv_bias, pos_embedding,
                             patch_size, *, compute_dtype=jnp.bfloat16,
                             out_dtype=None, block_patches=256,
                             vmem_limit_bytes=None):
    """
    pixel_values : [B, C, H, W]   (NCHW, like PyTorch)
    conv_weight  : [D, C, P, P]   (nn.Conv2d weight)
    conv_bias    : [D]
    pos_embedding: [Np, D]        (nn.Embedding weight, Np = (H//P)*(W//P))
    returns      : [B, Np, D]
    """
    B, C, H, W = pixel_values.shape
    P = patch_size
    Hp, Wp = H // P, W // P
    Np = Hp * Wp
    D = conv_weight.shape[0]
    K = C * P * P
    if out_dtype is None:
        out_dtype = pixel_values.dtype

    # ---- glue (layout only, fused by XLA): downcast + patch extraction ----
    x = pixel_values.astype(compute_dtype)
    patches = x.reshape(B, C, Hp, P, Wp, P)
    patches = patches.transpose(0, 2, 4, 1, 3, 5).reshape(B, Np, K)

    # Flattened conv weight matching the (C, Ph, Pw) patch order.
    w_mat = conv_weight.reshape(D, K).T.astype(compute_dtype)          # [K, D]

    # Lane-align the contraction dim (zero padding keeps the dot exact).
    Kp = _round_up(K, 128)
    if Kp != K:
        patches = jnp.pad(patches, ((0, 0), (0, 0), (0, Kp - K)))
        w_mat = jnp.pad(w_mat, ((0, Kp - K), (0, 0)))

    # Fold the conv bias into the position embedding (f32 epilogue add).
    pos_plus_bias = (pos_embedding.astype(jnp.float32)
                     + conv_bias.astype(jnp.float32)[None, :])         # [Np, D]

    # ---- patch-axis tiling (sublane-aligned; pad Np if necessary) ----
    tn, Np_pad = _choose_tile_and_pad(Np, block_patches)
    if Np_pad != Np:
        patches = jnp.pad(patches, ((0, 0), (0, Np_pad - Np), (0, 0)))
        pos_plus_bias = jnp.pad(pos_plus_bias, ((0, Np_pad - Np), (0, 0)))

    grid = (B, Np_pad // tn)

    out = pl.pallas_call(
        _embed_kernel,
        out_shape=jax.ShapeDtypeStruct((B, Np_pad, D), out_dtype),
        grid_spec=pltpu.PrefetchScalarGridSpec(
            num_scalar_prefetch=0,
            grid=grid,
            in_specs=[
                # batch dim squeezed (None) -> kernel sees a 2-D (tn, Kp) ref
                pl.BlockSpec((None, tn, Kp), lambda b, n: (b, n, 0)),   # patches
                # grid-invariant weight: same block every step (fetched once)
                pl.BlockSpec((Kp, D), lambda b, n: (0, 0)),             # weight
                pl.BlockSpec((tn, D), lambda b, n: (n, 0)),             # pos + bias
            ],
            out_specs=pl.BlockSpec((None, tn, D), lambda b, n: (b, n, 0)),
        ),
        compiler_params=pltpu.CompilerParams(
            dimension_semantics=("parallel", "parallel"),
            vmem_limit_bytes=vmem_limit_bytes),
    )(patches, w_mat, pos_plus_bias)

    if Np_pad != Np:
        out = out[:, :Np, :]
    return out


def _reference(pixel_values, conv_weight, conv_bias, pos_embedding, patch_size):
    """Pure-JAX f32 reference matching PyTorch semantics."""
    out = jax.lax.conv_general_dilated(
        pixel_values, conv_weight,
        window_strides=(patch_size, patch_size),
        padding="VALID",
        dimension_numbers=("NCHW", "OIHW", "NCHW"),
    )
    out = out + conv_bias[None, :, None, None]
    B, D, Hp, Wp = out.shape
    out = out.reshape(B, D, Hp * Wp).transpose(0, 2, 1)    # flatten(2).transpose(1,2)
    return out + pos_embedding[None]                       # position_ids = arange(Np)


if __name__ == "__main__":
    # Small SiglipVisionConfig-like settings
    B, C, H, W = 2, 4, 16, 16          # batch, num_channels, image_size
    P = 4                              # patch_size
    D = 32                             # hidden_size
    Np = (H // P) * (W // P)           # num_patches = num_positions = 16

    key = jax.random.PRNGKey(0)
    k1, k2, k3, k4 = jax.random.split(key, 4)
    pixel_values = jax.random.normal(k1, (B, C, H, W), dtype=jnp.float32)
    conv_weight = 0.05 * jax.random.normal(k2, (D, C, P, P), dtype=jnp.float32)
    conv_bias = 0.01 * jax.random.normal(k3, (D,), dtype=jnp.float32)
    pos_embedding = 0.02 * jax.random.normal(k4, (Np, D), dtype=jnp.float32)

    # block_patches=8 -> grid = (2, 2): exercises the patch-tiled pipeline even
    # at these tiny shapes.
    out = siglip_vision_embeddings(pixel_values, conv_weight, conv_bias,
                                   pos_embedding, P, block_patches=8)
    out = jax.block_until_ready(out)

    ref = _reference(pixel_values, conv_weight, conv_bias, pos_embedding, P)
    assert out.shape == (B, Np, D)
    # bf16 operands (f32 accumulation) -> loosened tolerance vs the f32 reference.
    assert jnp.allclose(out, ref, atol=2e-2, rtol=2e-2), \
        float(jnp.max(jnp.abs(out - ref)))

    print("KERNEL_OK")
</pallas_src>

<mosaic_0001>
module attributes {stable_mosaic.version = 11 : i64} {
  func.func @_embed_kernel(%arg0: i32, %arg1: i32, %arg2: memref<1x8x128xbf16, #tpu.memory_space<vmem>>, %arg3: memref<128x32xbf16, #tpu.memory_space<vmem>>, %arg4: memref<8x32xf32, #tpu.memory_space<vmem>>, %arg5: memref<1x8x32xf32, #tpu.memory_space<vmem>>) attributes {dimension_semantics = [#tpu.dimension_semantics<parallel>, #tpu.dimension_semantics<parallel>], iteration_bounds = array<i64: 2, 2>, scalar_prefetch = 0 : i64, scratch_operands = 0 : i64, tpu.core_type = #tpu.core_type<tc>, window_params = [{transform_indices = @transform_0, window_bounds = array<i64: 1, 8, 128>}, {pipeline_mode = #tpu.pipeline_mode<synchronous>, transform_indices = @transform_1, window_bounds = array<i64: 128, 32>}, {transform_indices = @transform_2, window_bounds = array<i64: 8, 32>}, {transform_indices = @transform_3, window_bounds = array<i64: 1, 8, 32>}]} {
    %c0 = arith.constant 0 : index
    %c0_0 = arith.constant 0 : index
    %c0_1 = arith.constant 0 : index
    %0 = vector.load %arg2[%c0, %c0_0, %c0_1] : memref<1x8x128xbf16, #tpu.memory_space<vmem>>, vector<1x8x128xbf16>
    %1 = vector.shape_cast %0 : vector<1x8x128xbf16> to vector<8x128xbf16>
    %c0_2 = arith.constant 0 : index
    %c0_3 = arith.constant 0 : index
    %2 = vector.load %arg3[%c0_2, %c0_3] : memref<128x32xbf16, #tpu.memory_space<vmem>>, vector<128x32xbf16>
    %cst = arith.constant dense<0.000000e+00> : vector<8x32xf32>
    %3 = tpu.matmul %1, %2, %cst {dimension_numbers = #tpu.dot_dimension_numbers<[1], [0], [0], [1], [0, 0, 1, 1], [], []>} : vector<8x128xbf16>, vector<128x32xbf16>, vector<8x32xf32> -> vector<8x32xf32>
    %c0_4 = arith.constant 0 : index
    %c0_5 = arith.constant 0 : index
    %4 = vector.load %arg4[%c0_4, %c0_5] : memref<8x32xf32, #tpu.memory_space<vmem>>, vector<8x32xf32>
    %5 = arith.addf %3, %4 : vector<8x32xf32>
    %c0_6 = arith.constant 0 : index
    %c0_7 = arith.constant 0 : index
    %c0_8 = arith.constant 0 : index
    %6 = vector.load %arg5[%c0_6, %c0_7, %c0_8] : memref<1x8x32xf32, #tpu.memory_space<vmem>>, vector<1x8x32xf32>
    %7 = vector.shape_cast %6 : vector<1x8x32xf32> to vector<8x32xf32>
    %8 = vector.shape_cast %5 : vector<8x32xf32> to vector<1x8x32xf32>
    tpu.vector_store %arg5[%c0_6, %c0_7, %c0_8], %8 {strides = array<i32>} : memref<1x8x32xf32, #tpu.memory_space<vmem>>, vector<1x8x32xf32>,
    return
  }
  func.func @transform_0(%arg0: i32, %arg1: i32) -> (i32, i32, i32) {
    %c0_i32 = arith.constant 0 : i32
    %c0_i32_0 = arith.constant 0 : i32
    return %arg0, %arg1, %c0_i32 : i32, i32, i32
  }
  func.func @transform_1(%arg0: i32, %arg1: i32) -> (i32, i32) {
    %c0_i32 = arith.constant 0 : i32
    %c0_i32_0 = arith.constant 0 : i32
    %c0_i32_1 = arith.constant 0 : i32
    return %c0_i32, %c0_i32_0 : i32, i32
  }
  func.func @transform_2(%arg0: i32, %arg1: i32) -> (i32, i32) {
    %c0_i32 = arith.constant 0 : i32
    %c0_i32_0 = arith.constant 0 : i32
    return %arg1, %c0_i32 : i32, i32
  }
  func.func @transform_3(%arg0: i32, %arg1: i32) -> (i32, i32, i32) {
    %c0_i32 = arith.constant 0 : i32
    %c0_i32_0 = arith.constant 0 : i32
    return %arg0, %arg1, %c0_i32 : i32, i32, i32
  }
}

</mosaic_0001>

<llo_original>
// kernel: siglip_vision_embeddings.1
$region0: #{siglip_vision_embeddings.1}
  #allocation0 [shape = 'u32[]', space=smem, size = 0x4, offset = 0x4, fixed_abs, tag = 'smem constant byte address 0x4 - core index']
  #allocation1 [shape = 'u32[72,128]{1,0:T(1,128)}', space=vmem, size = 0x9000, scoped, tag = 'internal scratch']
  %s0 = inlined_call_operand.vmem [shape: bf16[2,16,128], index: 0, kind: input, shape index: {}]
  %s1 = inlined_call_operand.vmem [shape: bf16[128,32], index: 1, kind: input, shape index: {}]
  %s2 = inlined_call_operand.vmem [shape: f32[16,32], index: 2, kind: input, shape index: {}]
  %s3 = inlined_call_operand.hbm [shape: f32[2,16,32], index: 3, kind: output, shape index: {}]
  %s4 = sld [smem:[#allocation0]]
  $region45: #{siglip_vision_embeddings.1} parent=0
    _
  %s6 = ssub.s32 1, %s4
  %s7 = scalar_select 0, %s6, %s4
  $region1: #{siglip_vision_embeddings.1} parent=0
    #allocation2 [shape = 'u8[8192]{0}', space=vmem, size = 0x2000, scoped, tag = 'output window, operand 0']
    #allocation3 [shape = 's32[2]{0}', space=sflag, size = 0x8, scoped, tag = 'scoped memory for siglip_vision_embeddings.1']
    %8 = vsyncpa [#allocation3], 0
    %s9 = scalar_lea.sflag [#allocation3], 1
    %10 = vsyncpa %s9, 0
    loop: start=0, step=1, limit=6
    $region2: #{siglip_vision_embeddings.1} parent=1 // loop_pre_header
      _
    $region3: #{siglip_vision_embeddings.1} parent=1 // loop_header
      %s12 = sphi 0, %s16
      %p13 = scmp.ge.s32.totalorder %s12, 6
      %s19 = sphi 0, %s31
      %s20 = sphi 0, %s27
      %s21 = sphi 0, %s19
      %s22 = sphi 0, %s20
      %s23 = sphi 0, %s21
      %s24 = sphi 0, %s22
      %s36 = sphi 0, %s38
      %s39 = sphi 0, %s36
      %s40 = sphi 0, %s39
      %s56 = sphi 0, %s40
      %s60 = sphi 0, %s60
      %s62 = sphi 0, %s60
      %s63 = sphi 0, %s62
      %s77 = sphi 0, %s63
      %s83 = sphi 0, %s85
      %s86 = sphi 0, %s83
      %s87 = sphi 0, %s86
      %s103 = sphi 0, %s87
      %s111 = sphi 0, %s113
      %s114 = sphi 0, %s111
      %s115 = sphi 0, %s114
      %s131 = sphi 0, %s115
    $region4: #{siglip_vision_embeddings.1} parent=1 // loop_header_branch
      %15 = sbr.rel (%p13) target = $region8
    $region5: #{siglip_vision_embeddings.1} parent=1 // loop_body
      %s17 = ssub.s32 %s12, 1
      %s18 = ssub.s32 %s12, 2
      %s25 = sadd.s32 1, %s20
      %p26 = scmp.ge.s32.totalorder %s25, 2
      %s27 = scalar_select %p26, 0, %s25
      %s28 = sadd.s32 1, %s19
      %s29 = scalar_select %p26, %s28, %s19
      %p30 = scmp.ge.s32.totalorder %s29, 2
      %s31 = scalar_select %p30, 0, %s29
      %s32 = ssub.s32 %s19, %s31
      %s33 = ssub.s32 %s20, %s27
      %s34 = sor.u32 %s32, %s33
      %p35 = scmp.eq.s32.totalorder %s34, 0
      %s37 = sadd.s32 %s36, 1
      %s38 = scalar_select %p35, %s36, %s37
      %p41 = pneg %p35
      %p42 = scmp.eq.s32.totalorder %s12, 3
      %p43 = por %p41, %p42
      %p44 = scmp.ne.s32.totalorder %s36, %s39
      %p45 = scmp.eq.s32.totalorder %s12, 0
      %p46 = por %p44, %p45
      %p47 = scmp.ne.s32.totalorder %s36, %s39
      %p48 = scmp.eq.s32.totalorder %s17, 3
      %p49 = por %p47, %p48
      %p50 = scmp.ne.s32.totalorder %s39, %s40
      %p51 = scmp.eq.s32.totalorder %s17, 0
      %p52 = por %p50, %p51
      %p53 = scmp.ne.s32.totalorder %s39, %s40
      %p54 = scmp.eq.s32.totalorder %s18, 3
      %p55 = por %p53, %p54
      %p57 = scmp.ne.s32.totalorder %s40, %s56
      %p58 = scmp.eq.s32.totalorder %s18, 0
      %p59 = por %p57, %p58
      %s61 = sadd.s32 %s60, 1
      %p64 = scmp.eq.s32.totalorder %s12, 3
      %p65 = scmp.ne.s32.totalorder %s60, %s62
      %p66 = scmp.eq.s32.totalorder %s12, 0
      %p67 = por %p65, %p66
      %p68 = scmp.ne.s32.totalorder %s60, %s62
      %p69 = scmp.eq.s32.totalorder %s17, 3
      %p70 = por %p68, %p69
      %p71 = scmp.ne.s32.totalorder %s62, %s63
      %p72 = scmp.eq.s32.totalorder %s17, 0
      %p73 = por %p71, %p72
      %p74 = scmp.ne.s32.totalorder %s62, %s63
      %p75 = scmp.eq.s32.totalorder %s18, 3
      %p76 = por %p74, %p75
      %p78 = scmp.ne.s32.totalorder %s63, %s77
      %p79 = scmp.eq.s32.totalorder %s18, 0
      %p80 = por %p78, %p79
      %s81 = ssub.s32 %s20, %s27
      %p82 = scmp.eq.s32.totalorder %s81, 0
      %s84 = sadd.s32 %s83, 1
      %s85 = scalar_select %p82, %s83, %s84
      %p88 = pneg %p82
      %p89 = scmp.eq.s32.totalorder %s12, 3
      %p90 = por %p88, %p89
      %p91 = scmp.ne.s32.totalorder %s83, %s86
      %p92 = scmp.eq.s32.totalorder %s12, 0
      %p93 = por %p91, %p92
      %p94 = scmp.ne.s32.totalorder %s83, %s86
      %p95 = scmp.eq.s32.totalorder %s17, 3
      %p96 = por %p94, %p95
      %p97 = scmp.ne.s32.totalorder %s86, %s87
      %p98 = scmp.eq.s32.totalorder %s17, 0
      %p99 = por %p97, %p98
      %p100 = scmp.ne.s32.totalorder %s86, %s87
      %p101 = scmp.eq.s32.totalorder %s18, 3
      %p102 = por %p100, %p101
      %p104 = scmp.ne.s32.totalorder %s87, %s103
      %p105 = scmp.eq.s32.totalorder %s18, 0
      %p106 = por %p104, %p105
      %s107 = ssub.s32 %s19, %s31
      %s108 = ssub.s32 %s20, %s27
      %s109 = sor.u32 %s107, %s108
      %p110 = scmp.eq.s32.totalorder %s109, 0
      %s112 = sadd.s32 %s111, 1
      %s113 = scalar_select %p110, %s111, %s112
      %p116 = pneg %p110
      %p117 = scmp.eq.s32.totalorder %s12, 3
      %p118 = por %p116, %p117
      %p119 = scmp.ne.s32.totalorder %s111, %s114
      %p120 = scmp.eq.s32.totalorder %s12, 0
      %p121 = por %p119, %p120
      %p122 = scmp.ne.s32.totalorder %s111, %s114
      %p123 = scmp.eq.s32.totalorder %s17, 3
      %p124 = por %p122, %p123
      %p125 = scmp.ne.s32.totalorder %s114, %s115
      %p126 = scmp.eq.s32.totalorder %s17, 0
      %p127 = por %p125, %p126
      %p128 = scmp.ne.s32.totalorder %s114, %s115
      %p129 = scmp.eq.s32.totalorder %s18, 3
      %p130 = por %p128, %p129
      %p132 = scmp.ne.s32.totalorder %s115, %s131
      %p133 = scmp.eq.s32.totalorder %s18, 0
      %p134 = por %p132, %p133
      %p135 = scmp.le.s32.totalorder 1, %s12
      %p136 = scmp.lt.s32.totalorder %s12, 5
      %p137 = pnand %p135, %p136
      %p138 = pneg %p137
      // Predicated region
      $region9: #{siglip_vision_embeddings.1} parent=5 // pred_check
        _
      $region10: #{siglip_vision_embeddings.1} parent=5 // pred_check_branch
        %140 = sbr.rel (%p137) target = $region12
      $region11: #{siglip_vision_embeddings.1} parent=5 // pred_region
        %s141 = ssub.s32 %s12, 1
        // Predicated region
        $region13: #{siglip_vision_embeddings.1} parent=11 // pred_check
          %p142 = pneg %p73
        $region14: #{siglip_vision_embeddings.1} parent=11 // pred_check_branch
          %144 = sbr.rel (%p142) target = $region16
        $region15: #{siglip_vision_embeddings.1} parent=11 // pred_region
          _
        $region16: #{siglip_vision_embeddings.1} parent=11 // pred_fallthru
          _
      $region12: #{siglip_vision_embeddings.1} parent=5 // pred_fallthru
        _
      %p145 = scmp.lt.s32.totalorder %s12, 4
      // Predicated region
      $region17: #{siglip_vision_embeddings.1} parent=5 // pred_check
        %p146 = pneg %p145
      $region18: #{siglip_vision_embeddings.1} parent=5 // pred_check_branch
        %148 = sbr.rel (%p146) target = $region20
      $region19: #{siglip_vision_embeddings.1} parent=5 // pred_region
        // Predicated region
        $region21: #{siglip_vision_embeddings.1} parent=19 // pred_check
          %p149 = pneg %p46
        $region22: #{siglip_vision_embeddings.1} parent=19 // pred_check_branch
          %151 = sbr.rel (%p149) target = $region24
        $region23: #{siglip_vision_embeddings.1} parent=19 // pred_region
          %p152 = scmp.lt.s32.totalorder %s19, 1
          %s153 = scalar_select %p152, %s19, 1
          %p154 = scmp.lt.s32.totalorder %s20, 1
          %s155 = scalar_select %p154, %s20, 1
          %s156 = smul.addr %s153, 2
          %s157 = sadd.s32 %s155, %s156
          %s158 = smul.addr %s157, 4
          %s159 = scalar_lea.vmem %s0, %s158
        $region24: #{siglip_vision_embeddings.1} parent=19 // pred_fallthru
          _
        // Predicated region
        $region25: #{siglip_vision_embeddings.1} parent=19 // pred_check
          %p160 = pneg %p93
        $region26: #{siglip_vision_embeddings.1} parent=19 // pred_check_branch
          %162 = sbr.rel (%p160) target = $region28
        $region27: #{siglip_vision_embeddings.1} parent=19 // pred_region
          %p163 = scmp.lt.s32.totalorder %s20, 1
          %s164 = scalar_select %p163, %s20, 1
          %s165 = smul.addr %s164, 8
          %s166 = scalar_lea.vmem %s2, %s165
        $region28: #{siglip_vision_embeddings.1} parent=19 // pred_fallthru
          _
      $region20: #{siglip_vision_embeddings.1} parent=5 // pred_fallthru
        _
      %p167 = scmp.le.s32.totalorder 1, %s12
      %p168 = scmp.lt.s32.totalorder %s12, 5
      %p169 = pnand %p167, %p168
      %p170 = pneg %p169
      // Predicated region
      $region29: #{siglip_vision_embeddings.1} parent=5 // pred_check
        _
      $region30: #{siglip_vision_embeddings.1} parent=5 // pred_check_branch
        %172 = sbr.rel (%p169) target = $region32
      $region31: #{siglip_vision_embeddings.1} parent=5 // pred_region
        %s173 = ssub.s32 %s12, 1
        %p174 = scmp.lt.s32.totalorder %s21, 1
        %s175 = scalar_select %p174, %s21, 1
        %p176 = scmp.lt.s32.totalorder %s22, 1
        %s177 = scalar_select %p176, %s22, 1
        %s178 = smul.addr %s175, 2
        %s179 = sadd.s32 %s177, %s178
        %s180 = smul.addr %s179, 4
        %s181 = scalar_lea.vmem %s0, %s180
        %p182 = pneg %p52
        %p183 = pneg %p49
        %p184 = pneg %p73
        %p185 = pneg %p70
        %p186 = scmp.lt.s32.totalorder %s22, 1
        %s187 = scalar_select %p186, %s22, 1
        %s188 = smul.addr %s187, 8
        %s189 = scalar_lea.vmem %s2, %s188
        %p190 = pneg %p99
        %p191 = pneg %p96
        %p192 = pneg %p127
        %p193 = pneg %p124
        %s194 = sand.u32 %s114, 1
        %s195 = scalar_lea.sflag [#allocation3], %s194
        %s196 = sand.u32 %s114, 1
        %s197 = smul.addr %s196, 8
        %s198 = scalar_lea.vmem [#allocation2], %s197
        %p199 = scmp.lt.s32.totalorder %s21, 1
        %s200 = scalar_select %p199, %s21, 1
        %p201 = scmp.lt.s32.totalorder %s22, 1
        %s202 = scalar_select %p201, %s22, 1
        %s203 = smul.addr %s200, 2
        %s204 = sadd.s32 %s202, %s203
        %s205 = smul.addr %s204, 4
        %s206 = scalar_lea.vmem %s0, %s205
        %p207 = scmp.lt.s32.totalorder %s22, 1
        %s208 = scalar_select %p207, %s22, 1
        %s209 = smul.addr %s208, 8
        %s210 = scalar_lea.vmem %s2, %s209
        %v211 = vld [vmem:[%s206] sm:$0xf]
        %v212 = vld [vmem:[%s1] sm:$0xf]
        %v213 = vld [vmem:[%s1 + $0x4] sm:$0xf]
        %v214 = vld [vmem:[%s1 + $0x8] sm:$0xf]
        %v215 = vld [vmem:[%s1 + $0xc] sm:$0xf]
        %v216 = vld [vmem:[%s1 + $0x10] sm:$0xf]
        %v217 = vld [vmem:[%s1 + $0x14] sm:$0xf]
        %v218 = vld [vmem:[%s1 + $0x18] sm:$0xf]
        %v219 = vld [vmem:[%s1 + $0x1c] sm:$0xf]
        %v220 = vld [vmem:[%s1 + $0x20] sm:$0xf]
        %v221 = vld [vmem:[%s1 + $0x24] sm:$0xf]
        %v222 = vld [vmem:[%s1 + $0x28] sm:$0xf]
        %v223 = vld [vmem:[%s1 + $0x2c] sm:$0xf]
        %v224 = vld [vmem:[%s1 + $0x30] sm:$0xf]
        %v225 = vld [vmem:[%s1 + $0x34] sm:$0xf]
        %v226 = vld [vmem:[%s1 + $0x38] sm:$0xf]
        %v227 = vld [vmem:[%s1 + $0x3c] sm:$0xf]
        %v228 = vld [vmem:[%s210] sm:$0xff]
        %v245 = vunpack.c.l.b16 %v212
        %v246 = vunpack.c.l.b16 %v213
        %v247 = vunpack.c.l.b16 %v214
        %v248 = vunpack.c.l.b16 %v215
        %v249 = vunpack.c.l.b16 %v216
        %v250 = vunpack.c.l.b16 %v217
        %v251 = vunpack.c.l.b16 %v218
        %v252 = vunpack.c.l.b16 %v219
        %v253 = vunpack.c.l.b16 %v220
        %v254 = vunpack.c.l.b16 %v221
        %v255 = vunpack.c.l.b16 %v222
        %v256 = vunpack.c.l.b16 %v223
        %v257 = vunpack.c.l.b16 %v224
        %v258 = vunpack.c.l.b16 %v225
        %v259 = vunpack.c.l.b16 %v226
        %v260 = vunpack.c.l.b16 %v227
        %v261 = vpack.c.b16 %v246, %v245
        %v262 = vpack.c.b16 %v248, %v247
        %v263 = vpack.c.b16 %v250, %v249
        %v264 = vpack.c.b16 %v252, %v251
        %v265 = vpack.c.b16 %v254, %v253
        %v266 = vpack.c.b16 %v256, %v255
        %v267 = vpack.c.b16 %v258, %v257
        %v268 = vpack.c.b16 %v260, %v259
        %277 = vmatpush.bf16.msra.mxu0 %v268
        %278 = vmatpush.bf16.msra.mxu0 %v267
        %279 = vmatpush.bf16.msra.mxu0 %v266
        %280 = vmatpush.bf16.msra.mxu0 %v265
        %281 = vmatpush.bf16.msra.mxu0 %v264
        %282 = vmatpush.bf16.msra.mxu0 %v263
        %283 = vmatpush.bf16.msra.mxu0 %v262
        %284 = vmatpush.bf16.msra.mxu0 %v261
        %285 = vmatmul.bf16.gmra.mxu0 %v211
        %v286 = vpop.f32.mrf.mxu0
        %v287 = vadd.f32 %v228, %v286
        %v288 = vpop.f32.mrf.mxu0
        %289 = vdwg.mxu0
        %vm290 = vcmask 261120
        %291 = vst.msk [vmem:[%s198] sm:$0xff] %vm290, %v287
        %s292 = sand.u32 %s114, 1
        %s293 = scalar_lea.sflag [#allocation3], %s292
        %s294 = sand.u32 %s114, 1
        %s295 = smul.addr %s294, 8
        %s296 = scalar_lea.vmem [#allocation2], %s295
        // Predicated region
        $region33: #{siglip_vision_embeddings.1} parent=31 // pred_check
          %p297 = pneg %p124
        $region34: #{siglip_vision_embeddings.1} parent=31 // pred_check_branch
          %299 = sbr.rel (%p297) target = $region36
        $region35: #{siglip_vision_embeddings.1} parent=31 // pred_region
          %301 = vsyncadd %s293, 0
          %s302 = smul.addr %s21, 2
          %s303 = sadd.s32 %s22, %s302
          %s304 = smul.addr %s303, 8
          %s305 = scalar_lea.hbm %s3, %s304
          %s307 = sshll.u32 %s296, 4
          %s308 = int_to_ptr.vmem [resolvable:$true] %s307
          %s309 = sshll.u32 %s305, 4
          %s310 = int_to_ptr.hbm [resolvable:$true] %s309
          %312 = dma.vmem_to_hbm [thread:$0]  %s308, 128, %s310, %s293
        $region36: #{siglip_vision_embeddings.1} parent=31 // pred_fallthru
          _
      $region32: #{siglip_vision_embeddings.1} parent=5 // pred_fallthru
        _
      %p313 = scmp.le.s32.totalorder 2, %s12
      // Predicated region
      $region37: #{siglip_vision_embeddings.1} parent=5 // pred_check
        %p314 = pneg %p313
      $region38: #{siglip_vision_embeddings.1} parent=5 // pred_check_branch
        %316 = sbr.rel (%p314) target = $region40
      $region39: #{siglip_vision_embeddings.1} parent=5 // pred_region
        %s317 = ssub.s32 %s12, 2
        // Predicated region
        $region41: #{siglip_vision_embeddings.1} parent=39 // pred_check
          %p318 = pneg %p130
        $region42: #{siglip_vision_embeddings.1} parent=39 // pred_check_branch
          %320 = sbr.rel (%p318) target = $region44
        $region43: #{siglip_vision_embeddings.1} parent=39 // pred_region
          %s321 = sand.u32 %s115, 1
          %s322 = scalar_lea.sflag [#allocation3], %s321
          %s323 = sand.u32 %s115, 1
          %s324 = smul.addr %s323, 8
          %s325 = scalar_lea.vmem [#allocation2], %s324
          %327 = dma.done %s322, 128
        $region44: #{siglip_vision_embeddings.1} parent=39 // pred_fallthru
          _
      $region40: #{siglip_vision_embeddings.1} parent=5 // pred_fallthru
        _
    $region6: #{siglip_vision_embeddings.1} parent=1 // loop_footer
      %s16 = sadd.s32 1, %s12
    $region7: #{siglip_vision_embeddings.1} parent=1 // loop_footer_branch
      %11 = sbr.rel target = $region3
    $region8: #{siglip_vision_embeddings.1} parent=1 // loop_exit
      _
    %328 = vsyncpa [#allocation3], 1
    %s329 = scalar_lea.sflag [#allocation3], 1
    %330 = vsyncpa %s329, 1

</llo_original>
